<compile_context>
chip_gen: v7x
topology: tpu7x:2x2x1
jax: 0.10.0
libtpu: 0.0.40
codegen_flags: <defaults>
</compile_context>

<pallas_src>
import functools

import jax
import jax.numpy as jnp
from jax.experimental import pallas as pl
from jax.experimental.pallas import tpu as pltpu


def _round_up(v, m):
    return (v + m - 1) // m * m


def _cdiv(a, b):
    return (a + b - 1) // b


def _vmem_capacity_bytes():
    try:
        return int(pltpu.get_tpu_info().vmem_capacity_bytes)
    except Exception:
        return 64 * 1024 * 1024      # conservative default (v7x per-TC VMEM)


_VMEM_CAP_BYTES = _vmem_capacity_bytes()


# ------------- Variant A: weights fully VMEM-resident (tile_h == H) ----------
def _mlp_kernel_resident(x_ref, w1_ref, b1_ref, w2_ref, b2_ref, o_ref, *,
                         approx_gelu, compute_dtype):
    # x_ref:  (tm, C_in)   token tile (input dtype; cast on the VPU)
    # w1_ref: (H, C_in)    fc1 weight, PyTorch layout, DMA'd once (const index)
    # b1_ref: (1, H)       f32
    # w2_ref: (C_out, H)   fc2 weight, PyTorch layout, DMA'd once (const index)
    # b2_ref: (1, C_out)   f32
    # o_ref:  (tm, C_out)
    x = x_ref[...].astype(compute_dtype)
    w1 = w1_ref[...].astype(compute_dtype)
    # fc1: contract last dims of (tm, C_in) x (H, C_in) -> (tm, H), f32 acc.
    h = jax.lax.dot_general(x, w1, (((1,), (1,)), ((), ())),
                            preferred_element_type=jnp.float32)
    h = h + b1_ref[...]
    h = jax.nn.gelu(h, approximate=approx_gelu)   # tanh path rides the EUP
    # drop(p=0.0) -> identity
    w2 = w2_ref[...].astype(compute_dtype)
    out = jax.lax.dot_general(h.astype(compute_dtype), w2,
                              (((1,), (1,)), ((), ())),
                              preferred_element_type=jnp.float32)
    o_ref[...] = (out + b2_ref[...]).astype(o_ref.dtype)
    # drop(p=0.0) -> identity


# ------------- Variant B: hidden dim tiled on a reduction axis ---------------
def _mlp_kernel_tiled(x_ref, w1_ref, b1_ref, w2_ref, b2_ref, o_ref, acc_ref, *,
                      approx_gelu, compute_dtype):
    # x_ref:  (tm, C_in)     w1_ref: (th, C_in)     b1_ref: (1, th)
    # w2_ref: (C_out, th)    b2_ref: (1, C_out)     o_ref:  (tm, C_out)
    # acc_ref:(tm, C_out) f32 accumulator scratch
    h_idx = pl.program_id(1)

    @pl.when(h_idx == 0)
    def _():
        acc_ref[...] = jnp.zeros_like(acc_ref)

    x = x_ref[...].astype(compute_dtype)
    w1 = w1_ref[...].astype(compute_dtype)
    h = jax.lax.dot_general(x, w1, (((1,), (1,)), ((), ())),
                            preferred_element_type=jnp.float32)   # (tm, th)
    h = h + b1_ref[...]
    h = jax.nn.gelu(h, approximate=approx_gelu)

    w2 = w2_ref[...].astype(compute_dtype)
    acc_ref[...] += jax.lax.dot_general(h.astype(compute_dtype), w2,
                                        (((1,), (1,)), ((), ())),
                                        preferred_element_type=jnp.float32)

    @pl.when(h_idx == pl.num_programs(1) - 1)
    def _():
        o_ref[...] = (acc_ref[...] + b2_ref[...]).astype(o_ref.dtype)


@functools.partial(
    jax.jit,
    static_argnames=("tile_m", "tile_h", "compute_dtype", "approx_gelu",
                     "weight_resident"))
def mlp_pallas(x, w1, b1, w2, b2, *, tile_m=512, tile_h=512,
               compute_dtype=jnp.bfloat16, approx_gelu=True,
               weight_resident=None):
    """x: (B, N, C_in); w1: (H, C_in); b1: (H,); w2: (C_out, H); b2: (C_out,).

    tile_m: token-row tile (512-1024 recommended on v6e/v7x; 256-512 on v5e).
    tile_h: hidden-dim tile for the H-tiled fallback (multiple of 128).
    approx_gelu: tanh GELU (EUP) if True; exact erf (PyTorch parity) if False.
    weight_resident: None = auto (fit both weights in VMEM when possible).
    """
    B, N, C_in = x.shape
    H = w1.shape[0]
    C_out = w2.shape[0]
    out_dtype = x.dtype
    x_isz = jnp.dtype(x.dtype).itemsize
    w_isz = jnp.dtype(w1.dtype).itemsize
    c_isz = jnp.dtype(compute_dtype).itemsize
    o_isz = jnp.dtype(out_dtype).itemsize

    M = B * N
    # Row tiling: big tiles for arithmetic intensity, but keep >= 2 row tiles
    # when possible so the "parallel" axis can split across TensorCores.
    max_tm = _round_up(M, 8)
    tile_m = min(tile_m, max_tm)
    if max_tm >= 16 and _cdiv(M, tile_m) < 2:
        tile_m = _round_up(_cdiv(M, 2), 8)
    M_pad = _round_up(M, tile_m)
    num_m = M_pad // tile_m

    # VMEM budget: ~48 MiB on 64 MiB parts (v7x), ~96 MiB on 128 MiB parts.
    vmem_limit = max(32 * 1024 * 1024,
                     min(_VMEM_CAP_BYTES * 3 // 4, 112 * 1024 * 1024))

    # Estimate VMEM for the weight-resident variant (conservative: 2 buffers
    # per pipelined block + compute temporaries).
    resident_bytes = (
        2 * (tile_m * C_in * x_isz                       # x tile
             + tile_m * C_out * o_isz                    # out tile
             + (H * C_in + C_out * H) * w_isz            # w1 + w2 blocks
             + (H + C_out) * 4)                          # biases
        + tile_m * H * (4 + c_isz)                       # f32 h + bf16 h
        + (H * C_in + C_out * H) * c_isz                 # bf16 weight copies
        + tile_m * C_out * 4)                            # f32 out pre-cast
    if weight_resident is None:
        weight_resident = resident_bytes <= (vmem_limit * 4) // 5

    # Flatten tokens (no cast here -- the kernel casts on the VPU).
    x2d = x.reshape(M, C_in)
    if M_pad != M:
        x2d = jnp.pad(x2d, ((0, M_pad - M), (0, 0)))
    b1_2d = b1.reshape(1, H).astype(jnp.float32)
    b2_2d = b2.reshape(1, C_out).astype(jnp.float32)

    if weight_resident:
        grid = (num_m,)
        kernel = functools.partial(_mlp_kernel_resident,
                                   approx_gelu=approx_gelu,
                                   compute_dtype=compute_dtype)
        # TODO(synk): pipeline_mode=pl.Buffered(1) on the constant-index
        # weight/bias blocks would halve their VMEM footprint.
        in_specs = [
            pl.BlockSpec((tile_m, C_in), lambda i: (i, 0)),
            pl.BlockSpec((H, C_in), lambda i: (0, 0)),
            pl.BlockSpec((1, H), lambda i: (0, 0)),
            pl.BlockSpec((C_out, H), lambda i: (0, 0)),
            pl.BlockSpec((1, C_out), lambda i: (0, 0)),
        ]
        out_specs = pl.BlockSpec((tile_m, C_out), lambda i: (i, 0))
        scratch_shapes = []
        dim_sem = ("parallel",)
        flops = 2 * M_pad * (C_in * H + H * C_out)
        transcendentals = M_pad * H
        bytes_accessed = (M_pad * C_in * x_isz
                          + (H * C_in + C_out * H) * w_isz   # weights read once
                          + (H + C_out) * 4
                          + M_pad * C_out * o_isz)
        w1_in, b1_in, w2_in = w1, b1_2d, w2
    else:
        th = min(tile_h, H)
        if th < H:
            th = max(128, (th // 128) * 128)
        H_pad = _round_up(H, th)
        num_h = H_pad // th
        w1_in, b1_in, w2_in = w1, b1_2d, w2
        if H_pad != H:
            # Padded hidden units: gelu(0 + 0) = 0 against zero w2 columns.
            w1_in = jnp.pad(w1_in, ((0, H_pad - H), (0, 0)))
            b1_in = jnp.pad(b1_in, ((0, 0), (0, H_pad - H)))
            w2_in = jnp.pad(w2_in, ((0, 0), (0, H_pad - H)))
        grid = (num_m, num_h)
        kernel = functools.partial(_mlp_kernel_tiled,
                                   approx_gelu=approx_gelu,
                                   compute_dtype=compute_dtype)
        in_specs = [
            pl.BlockSpec((tile_m, C_in), lambda i, h: (i, 0)),
            pl.BlockSpec((th, C_in), lambda i, h: (h, 0)),
            pl.BlockSpec((1, th), lambda i, h: (0, h)),
            pl.BlockSpec((C_out, th), lambda i, h: (0, h)),
            pl.BlockSpec((1, C_out), lambda i, h: (0, 0)),
        ]
        out_specs = pl.BlockSpec((tile_m, C_out), lambda i, h: (i, 0))
        scratch_shapes = [pltpu.VMEM((tile_m, C_out), jnp.float32)]
        dim_sem = ("parallel", "arbitrary")
        flops = 2 * M_pad * (C_in * H_pad + H_pad * C_out)
        transcendentals = M_pad * H_pad
        bytes_accessed = (M_pad * C_in * x_isz
                          + num_m * (H_pad * C_in + C_out * H_pad) * w_isz
                          + num_m * (H_pad + C_out) * 4
                          + M_pad * C_out * o_isz)

    cost = pl.CostEstimate(flops=int(flops),
                           transcendentals=int(transcendentals),
                           bytes_accessed=int(bytes_accessed))

    out = pl.pallas_call(
        kernel,
        out_shape=jax.ShapeDtypeStruct((M_pad, C_out), out_dtype),
        grid_spec=pltpu.PrefetchScalarGridSpec(
            num_scalar_prefetch=0,
            grid=grid,
            in_specs=in_specs,
            out_specs=out_specs,
            scratch_shapes=scratch_shapes,
        ),
        compiler_params=pltpu.CompilerParams(
            dimension_semantics=dim_sem,
            vmem_limit_bytes=int(vmem_limit),
        ),
        cost_estimate=cost,
    )(x2d, w1_in, b1_in, w2_in, b2_2d)

    if M_pad != M:
        out = out[:M]
    return out.reshape(B, N, C_out)


def init_mlp_params(key, in_features, hidden_features=None, out_features=None,
                    dtype=jnp.float32):
    out_features = out_features or in_features
    hidden_features = hidden_features or in_features
    k1, k2, k3, k4 = jax.random.split(key, 4)
    lim1 = 1.0 / (in_features ** 0.5)
    lim2 = 1.0 / (hidden_features ** 0.5)
    w1 = jax.random.uniform(k1, (hidden_features, in_features), dtype, -lim1, lim1)
    b1 = jax.random.uniform(k2, (hidden_features,), dtype, -lim1, lim1)
    w2 = jax.random.uniform(k3, (out_features, hidden_features), dtype, -lim2, lim2)
    b2 = jax.random.uniform(k4, (out_features,), dtype, -lim2, lim2)
    return w1, b1, w2, b2


def mlp_reference(x, w1, b1, w2, b2):
    hi = jax.lax.Precision.HIGHEST
    h = jnp.dot(x, w1.T, precision=hi) + b1
    h = jax.nn.gelu(h, approximate=False)      # PyTorch nn.GELU default (erf)
    return jnp.dot(h, w2.T, precision=hi) + b2


if __name__ == "__main__":
    key = jax.random.PRNGKey(0)

    # --- Test 1: toy config (weight-resident path) --------------------------
    kx, kp, key = jax.random.split(key, 3)
    B, N, C_in, hidden = 2, 8, 16, 32
    x = jax.random.normal(kx, (B, N, C_in), dtype=jnp.float32)
    w1, b1, w2, b2 = init_mlp_params(kp, C_in, hidden_features=hidden)

    out = jax.block_until_ready(mlp_pallas(x, w1, b1, w2, b2))
    ref = mlp_reference(x, w1, b1, w2, b2)
    assert out.shape == (B, N, w2.shape[0])
    assert jnp.allclose(out, ref, atol=2e-2, rtol=2e-2), "mismatch (test 1)"

    # --- Test 2: medium shapes, auto (weight-resident, 2 row tiles) ----------
    kx2, kp2, key = jax.random.split(key, 3)
    B2, N2, C2, H2 = 2, 192, 128, 320
    x2 = jax.random.normal(kx2, (B2, N2, C2), dtype=jnp.float32)
    p2 = init_mlp_params(kp2, C2, hidden_features=H2)

    out2 = jax.block_until_ready(mlp_pallas(x2, *p2))
    ref2 = mlp_reference(x2, *p2)
    assert out2.shape == (B2, N2, C2)
    assert jnp.allclose(out2, ref2, atol=3e-2, rtol=3e-2), "mismatch (test 2)"

    # --- Test 3: force the H-tiled reduction path (accumulator variant) ------
    out3 = jax.block_until_ready(
        mlp_pallas(x2, *p2, tile_m=128, tile_h=128, weight_resident=False))
    assert out3.shape == (B2, N2, C2)
    assert jnp.allclose(out3, ref2, atol=3e-2, rtol=3e-2), "mismatch (test 3)"

    print("KERNEL_OK")
</pallas_src>

<mosaic_0001>
module attributes {stable_mosaic.version = 11 : i64} {
  func.func @_mlp_kernel_resident(%arg0: i32, %arg1: memref<8x16xf32, #tpu.memory_space<vmem>>, %arg2: memref<32x16xf32, #tpu.memory_space<vmem>>, %arg3: memref<1x32xf32, #tpu.memory_space<vmem>>, %arg4: memref<16x32xf32, #tpu.memory_space<vmem>>, %arg5: memref<1x16xf32, #tpu.memory_space<vmem>>, %arg6: memref<8x16xf32, #tpu.memory_space<vmem>>) attributes {dimension_semantics = [#tpu.dimension_semantics<parallel>], iteration_bounds = array<i64: 2>, scalar_prefetch = 0 : i64, scratch_operands = 0 : i64, tpu.core_type = #tpu.core_type<tc>, window_params = [{transform_indices = @transform_0, window_bounds = array<i64: 8, 16>}, {pipeline_mode = #tpu.pipeline_mode<synchronous>, transform_indices = @transform_1, window_bounds = array<i64: 32, 16>}, {pipeline_mode = #tpu.pipeline_mode<synchronous>, transform_indices = @transform_2, window_bounds = array<i64: 1, 32>}, {pipeline_mode = #tpu.pipeline_mode<synchronous>, transform_indices = @transform_3, window_bounds = array<i64: 16, 32>}, {pipeline_mode = #tpu.pipeline_mode<synchronous>, transform_indices = @transform_4, window_bounds = array<i64: 1, 16>}, {transform_indices = @transform_5, window_bounds = array<i64: 8, 16>}]} {
    %c0 = arith.constant 0 : index
    %c0_0 = arith.constant 0 : index
    %0 = vector.load %arg1[%c0, %c0_0] : memref<8x16xf32, #tpu.memory_space<vmem>>, vector<8x16xf32>
    %1 = arith.truncf %0 : vector<8x16xf32> to vector<8x16xbf16>
    %c0_1 = arith.constant 0 : index
    %c0_2 = arith.constant 0 : index
    %2 = vector.load %arg2[%c0_1, %c0_2] : memref<32x16xf32, #tpu.memory_space<vmem>>, vector<32x16xf32>
    %3 = arith.truncf %2 : vector<32x16xf32> to vector<32x16xbf16>
    %cst = arith.constant dense<0.000000e+00> : vector<8x32xf32>
    %4 = tpu.matmul %1, %3, %cst {dimension_numbers = #tpu.dot_dimension_numbers<[1], [1], [0], [0], [0, 0, 1, 0], [], []>} : vector<8x16xbf16>, vector<32x16xbf16>, vector<8x32xf32> -> vector<8x32xf32>
    %c0_3 = arith.constant 0 : index
    %c0_4 = arith.constant 0 : index
    %5 = vector.load %arg3[%c0_3, %c0_4] : memref<1x32xf32, #tpu.memory_space<vmem>>, vector<1x32xf32>
    %6 = vector.broadcast %5 : vector<1x32xf32> to vector<8x32xf32>
    %7 = arith.addf %4, %6 : vector<8x32xf32>
    %8 = arith.mulf %7, %7 : vector<8x32xf32>
    %9 = arith.mulf %7, %8 : vector<8x32xf32>
    %cst_5 = arith.constant 4.471500e-02 : f32
    %10 = vector.broadcast %cst_5 : f32 to vector<8x32xf32>
    %11 = arith.mulf %10, %9 : vector<8x32xf32>
    %12 = arith.addf %7, %11 : vector<8x32xf32>
    %cst_6 = arith.constant 0.797884583 : f32
    %13 = vector.broadcast %cst_6 : f32 to vector<8x32xf32>
    %14 = arith.mulf %13, %12 : vector<8x32xf32>
    %15 = math.tanh %14 : vector<8x32xf32>
    %cst_7 = arith.constant 1.000000e+00 : f32
    %16 = vector.broadcast %cst_7 : f32 to vector<8x32xf32>
    %17 = arith.addf %16, %15 : vector<8x32xf32>
    %cst_8 = arith.constant 5.000000e-01 : f32
    %18 = vector.broadcast %cst_8 : f32 to vector<8x32xf32>
    %19 = arith.mulf %18, %17 : vector<8x32xf32>
    %20 = arith.mulf %7, %19 : vector<8x32xf32>
    %c0_9 = arith.constant 0 : index
    %c0_10 = arith.constant 0 : index
    %21 = vector.load %arg4[%c0_9, %c0_10] : memref<16x32xf32, #tpu.memory_space<vmem>>, vector<16x32xf32>
    %22 = arith.truncf %21 : vector<16x32xf32> to vector<16x32xbf16>
    %23 = arith.truncf %20 : vector<8x32xf32> to vector<8x32xbf16>
    %cst_11 = arith.constant dense<0.000000e+00> : vector<8x16xf32>
    %24 = tpu.matmul %23, %22, %cst_11 {dimension_numbers = #tpu.dot_dimension_numbers<[1], [1], [0], [0], [0, 0, 1, 0], [], []>} : vector<8x32xbf16>, vector<16x32xbf16>, vector<8x16xf32> -> vector<8x16xf32>
    %c0_12 = arith.constant 0 : index
    %c0_13 = arith.constant 0 : index
    %25 = vector.load %arg5[%c0_12, %c0_13] : memref<1x16xf32, #tpu.memory_space<vmem>>, vector<1x16xf32>
    %26 = vector.broadcast %25 : vector<1x16xf32> to vector<8x16xf32>
    %27 = arith.addf %24, %26 : vector<8x16xf32>
    %c0_14 = arith.constant 0 : index
    %c0_15 = arith.constant 0 : index
    %28 = vector.load %arg6[%c0_14, %c0_15] : memref<8x16xf32, #tpu.memory_space<vmem>>, vector<8x16xf32>
    tpu.vector_store %arg6[%c0_14, %c0_15], %27 {strides = array<i32>} : memref<8x16xf32, #tpu.memory_space<vmem>>, vector<8x16xf32>,
    return
  }
  func.func @transform_0(%arg0: i32) -> (i32, i32) {
    %c0_i32 = arith.constant 0 : i32
    %c0_i32_0 = arith.constant 0 : i32
    return %arg0, %c0_i32 : i32, i32
  }
  func.func @transform_1(%arg0: i32) -> (i32, i32) {
    %c0_i32 = arith.constant 0 : i32
    %c0_i32_0 = arith.constant 0 : i32
    %c0_i32_1 = arith.constant 0 : i32
    return %c0_i32, %c0_i32_0 : i32, i32
  }
  func.func @transform_2(%arg0: i32) -> (i32, i32) {
    %c0_i32 = arith.constant 0 : i32
    %c0_i32_0 = arith.constant 0 : i32
    %c0_i32_1 = arith.constant 0 : i32
    return %c0_i32, %c0_i32_0 : i32, i32
  }
  func.func @transform_3(%arg0: i32) -> (i32, i32) {
    %c0_i32 = arith.constant 0 : i32
    %c0_i32_0 = arith.constant 0 : i32
    %c0_i32_1 = arith.constant 0 : i32
    return %c0_i32, %c0_i32_0 : i32, i32
  }
  func.func @transform_4(%arg0: i32) -> (i32, i32) {
    %c0_i32 = arith.constant 0 : i32
    %c0_i32_0 = arith.constant 0 : i32
    %c0_i32_1 = arith.constant 0 : i32
    return %c0_i32, %c0_i32_0 : i32, i32
  }
  func.func @transform_5(%arg0: i32) -> (i32, i32) {
    %c0_i32 = arith.constant 0 : i32
    %c0_i32_0 = arith.constant 0 : i32
    return %arg0, %c0_i32 : i32, i32
  }
}

</mosaic_0001>

<llo_original>
// kernel: mlp_pallas.1
$region0: #{mlp_pallas.1}
  #allocation0 [shape = 'u32[]', space=smem, size = 0x4, offset = 0x4, fixed_abs, tag = 'smem constant byte address 0x4 - core index']
  #allocation1 [shape = 'u32[144,128]{1,0:T(1,128)}', space=vmem, size = 0x12000, scoped, tag = 'internal scratch']
  %s0 = inlined_call_operand.vmem [shape: f32[16,16], index: 0, kind: input, shape index: {}]
  %s1 = inlined_call_operand.vmem [shape: f32[32,16], index: 1, kind: input, shape index: {}]
  %s2 = inlined_call_operand.vmem [shape: f32[1,32], index: 2, kind: input, shape index: {}]
  %s3 = inlined_call_operand.vmem [shape: f32[16,32], index: 3, kind: input, shape index: {}]
  %s4 = inlined_call_operand.vmem [shape: f32[1,16], index: 4, kind: input, shape index: {}]
  %s5 = inlined_call_operand.hbm [shape: f32[16,16], index: 5, kind: output, shape index: {}]
  %s6 = sld [smem:[#allocation0]]
  $region53: #{mlp_pallas.1} parent=0
    _
  %s8 = ssub.s32 1, %s6
  %s9 = scalar_select 0, %s8, %s6
  $region1: #{mlp_pallas.1} parent=0
    #allocation2 [shape = 'u8[8192]{0}', space=vmem, size = 0x2000, scoped, tag = 'output window, operand 0']
    #allocation3 [shape = 's32[2]{0}', space=sflag, size = 0x8, scoped, tag = 'scoped memory for mlp_pallas.1']
    %10 = vsyncpa [#allocation3], 0
    %s11 = scalar_lea.sflag [#allocation3], 1
    %12 = vsyncpa %s11, 0
    loop: start=0, step=1, limit=4
    $region2: #{mlp_pallas.1} parent=1 // loop_pre_header
      _
    $region3: #{mlp_pallas.1} parent=1 // loop_header
      %s14 = sphi 0, %s18
      %p15 = scmp.ge.s32.totalorder %s14, 4
      %s24 = sphi 0, %s26
      %s27 = sphi 0, %s24
      %s28 = sphi 0, %s27
      %s44 = sphi 0, %s28
      %s48 = sphi 0, %s48
      %s50 = sphi 0, %s48
      %s51 = sphi 0, %s50
      %s65 = sphi 0, %s51
      %s69 = sphi 0, %s69
      %s71 = sphi 0, %s69
      %s72 = sphi 0, %s71
      %s86 = sphi 0, %s72
      %s90 = sphi 0, %s90
      %s92 = sphi 0, %s90
      %s93 = sphi 0, %s92
      %s107 = sphi 0, %s93
      %s111 = sphi 0, %s111
      %s113 = sphi 0, %s111
      %s114 = sphi 0, %s113
      %s128 = sphi 0, %s114
      %s134 = sphi 0, %s136
      %s137 = sphi 0, %s134
      %s138 = sphi 0, %s137
      %s154 = sphi 0, %s138
    $region4: #{mlp_pallas.1} parent=1 // loop_header_branch
      %17 = sbr.rel (%p15) target = $region8
    $region5: #{mlp_pallas.1} parent=1 // loop_body
      %s19 = ssub.s32 %s14, 1
      %s20 = ssub.s32 %s14, 2
      %s21 = sadd.s32 %s14, 1
      %s22 = ssub.s32 %s14, %s21
      %p23 = scmp.eq.s32.totalorder %s22, 0
      %s25 = sadd.s32 %s24, 1
      %s26 = scalar_select %p23, %s24, %s25
      %p29 = pneg %p23
      %p30 = scmp.eq.s32.totalorder %s14, 1
      %p31 = por %p29, %p30
      %p32 = scmp.ne.s32.totalorder %s24, %s27
      %p33 = scmp.eq.s32.totalorder %s14, 0
      %p34 = por %p32, %p33
      %p35 = scmp.ne.s32.totalorder %s24, %s27
      %p36 = scmp.eq.s32.totalorder %s19, 1
      %p37 = por %p35, %p36
      %p38 = scmp.ne.s32.totalorder %s27, %s28
      %p39 = scmp.eq.s32.totalorder %s19, 0
      %p40 = por %p38, %p39
      %p41 = scmp.ne.s32.totalorder %s27, %s28
      %p42 = scmp.eq.s32.totalorder %s20, 1
      %p43 = por %p41, %p42
      %p45 = scmp.ne.s32.totalorder %s28, %s44
      %p46 = scmp.eq.s32.totalorder %s20, 0
      %p47 = por %p45, %p46
      %s49 = sadd.s32 %s48, 1
      %p52 = scmp.eq.s32.totalorder %s14, 1
      %p53 = scmp.ne.s32.totalorder %s48, %s50
      %p54 = scmp.eq.s32.totalorder %s14, 0
      %p55 = por %p53, %p54
      %p56 = scmp.ne.s32.totalorder %s48, %s50
      %p57 = scmp.eq.s32.totalorder %s19, 1
      %p58 = por %p56, %p57
      %p59 = scmp.ne.s32.totalorder %s50, %s51
      %p60 = scmp.eq.s32.totalorder %s19, 0
      %p61 = por %p59, %p60
      %p62 = scmp.ne.s32.totalorder %s50, %s51
      %p63 = scmp.eq.s32.totalorder %s20, 1
      %p64 = por %p62, %p63
      %p66 = scmp.ne.s32.totalorder %s51, %s65
      %p67 = scmp.eq.s32.totalorder %s20, 0
      %p68 = por %p66, %p67
      %s70 = sadd.s32 %s69, 1
      %p73 = scmp.eq.s32.totalorder %s14, 1
      %p74 = scmp.ne.s32.totalorder %s69, %s71
      %p75 = scmp.eq.s32.totalorder %s14, 0
      %p76 = por %p74, %p75
      %p77 = scmp.ne.s32.totalorder %s69, %s71
      %p78 = scmp.eq.s32.totalorder %s19, 1
      %p79 = por %p77, %p78
      %p80 = scmp.ne.s32.totalorder %s71, %s72
      %p81 = scmp.eq.s32.totalorder %s19, 0
      %p82 = por %p80, %p81
      %p83 = scmp.ne.s32.totalorder %s71, %s72
      %p84 = scmp.eq.s32.totalorder %s20, 1
      %p85 = por %p83, %p84
      %p87 = scmp.ne.s32.totalorder %s72, %s86
      %p88 = scmp.eq.s32.totalorder %s20, 0
      %p89 = por %p87, %p88
      %s91 = sadd.s32 %s90, 1
      %p94 = scmp.eq.s32.totalorder %s14, 1
      %p95 = scmp.ne.s32.totalorder %s90, %s92
      %p96 = scmp.eq.s32.totalorder %s14, 0
      %p97 = por %p95, %p96
      %p98 = scmp.ne.s32.totalorder %s90, %s92
      %p99 = scmp.eq.s32.totalorder %s19, 1
      %p100 = por %p98, %p99
      %p101 = scmp.ne.s32.totalorder %s92, %s93
      %p102 = scmp.eq.s32.totalorder %s19, 0
      %p103 = por %p101, %p102
      %p104 = scmp.ne.s32.totalorder %s92, %s93
      %p105 = scmp.eq.s32.totalorder %s20, 1
      %p106 = por %p104, %p105
      %p108 = scmp.ne.s32.totalorder %s93, %s107
      %p109 = scmp.eq.s32.totalorder %s20, 0
      %p110 = por %p108, %p109
      %s112 = sadd.s32 %s111, 1
      %p115 = scmp.eq.s32.totalorder %s14, 1
      %p116 = scmp.ne.s32.totalorder %s111, %s113
      %p117 = scmp.eq.s32.totalorder %s14, 0
      %p118 = por %p116, %p117
      %p119 = scmp.ne.s32.totalorder %s111, %s113
      %p120 = scmp.eq.s32.totalorder %s19, 1
      %p121 = por %p119, %p120
      %p122 = scmp.ne.s32.totalorder %s113, %s114
      %p123 = scmp.eq.s32.totalorder %s19, 0
      %p124 = por %p122, %p123
      %p125 = scmp.ne.s32.totalorder %s113, %s114
      %p126 = scmp.eq.s32.totalorder %s20, 1
      %p127 = por %p125, %p126
      %p129 = scmp.ne.s32.totalorder %s114, %s128
      %p130 = scmp.eq.s32.totalorder %s20, 0
      %p131 = por %p129, %p130
      %s132 = ssub.s32 %s14, %s21
      %p133 = scmp.eq.s32.totalorder %s132, 0
      %s135 = sadd.s32 %s134, 1
      %s136 = scalar_select %p133, %s134, %s135
      %p139 = pneg %p133
      %p140 = scmp.eq.s32.totalorder %s14, 1
      %p141 = por %p139, %p140
      %p142 = scmp.ne.s32.totalorder %s134, %s137
      %p143 = scmp.eq.s32.totalorder %s14, 0
      %p144 = por %p142, %p143
      %p145 = scmp.ne.s32.totalorder %s134, %s137
      %p146 = scmp.eq.s32.totalorder %s19, 1
      %p147 = por %p145, %p146
      %p148 = scmp.ne.s32.totalorder %s137, %s138
      %p149 = scmp.eq.s32.totalorder %s19, 0
      %p150 = por %p148, %p149
      %p151 = scmp.ne.s32.totalorder %s137, %s138
      %p152 = scmp.eq.s32.totalorder %s20, 1
      %p153 = por %p151, %p152
      %p155 = scmp.ne.s32.totalorder %s138, %s154
      %p156 = scmp.eq.s32.totalorder %s20, 0
      %p157 = por %p155, %p156
      %p158 = scmp.le.s32.totalorder 1, %s14
      %p159 = scmp.lt.s32.totalorder %s14, 3
      %p160 = pnand %p158, %p159
      %p161 = pneg %p160
      // Predicated region
      $region9: #{mlp_pallas.1} parent=5 // pred_check
        _
      $region10: #{mlp_pallas.1} parent=5 // pred_check_branch
        %163 = sbr.rel (%p160) target = $region12
      $region11: #{mlp_pallas.1} parent=5 // pred_region
        %s164 = ssub.s32 %s14, 1
        // Predicated region
        $region13: #{mlp_pallas.1} parent=11 // pred_check
          %p165 = pneg %p61
        $region14: #{mlp_pallas.1} parent=11 // pred_check_branch
          %167 = sbr.rel (%p165) target = $region16
        $region15: #{mlp_pallas.1} parent=11 // pred_region
          _
        $region16: #{mlp_pallas.1} parent=11 // pred_fallthru
          _
        // Predicated region
        $region17: #{mlp_pallas.1} parent=11 // pred_check
          %p168 = pneg %p82
        $region18: #{mlp_pallas.1} parent=11 // pred_check_branch
          %170 = sbr.rel (%p168) target = $region20
        $region19: #{mlp_pallas.1} parent=11 // pred_region
          _
        $region20: #{mlp_pallas.1} parent=11 // pred_fallthru
          _
        // Predicated region
        $region21: #{mlp_pallas.1} parent=11 // pred_check
          %p171 = pneg %p103
        $region22: #{mlp_pallas.1} parent=11 // pred_check_branch
          %173 = sbr.rel (%p171) target = $region24
        $region23: #{mlp_pallas.1} parent=11 // pred_region
          _
        $region24: #{mlp_pallas.1} parent=11 // pred_fallthru
          _
        // Predicated region
        $region25: #{mlp_pallas.1} parent=11 // pred_check
          %p174 = pneg %p124
        $region26: #{mlp_pallas.1} parent=11 // pred_check_branch
          %176 = sbr.rel (%p174) target = $region28
        $region27: #{mlp_pallas.1} parent=11 // pred_region
          _
        $region28: #{mlp_pallas.1} parent=11 // pred_fallthru
          _
      $region12: #{mlp_pallas.1} parent=5 // pred_fallthru
        _
      %p177 = scmp.lt.s32.totalorder %s14, 2
      // Predicated region
      $region29: #{mlp_pallas.1} parent=5 // pred_check
        %p178 = pneg %p177
      $region30: #{mlp_pallas.1} parent=5 // pred_check_branch
        %180 = sbr.rel (%p178) target = $region32
      $region31: #{mlp_pallas.1} parent=5 // pred_region
        // Predicated region
        $region33: #{mlp_pallas.1} parent=31 // pred_check
          %p181 = pneg %p34
        $region34: #{mlp_pallas.1} parent=31 // pred_check_branch
          %183 = sbr.rel (%p181) target = $region36
        $region35: #{mlp_pallas.1} parent=31 // pred_region
          %p184 = scmp.lt.s32.totalorder %s14, 1
          %s185 = scalar_select %p184, %s14, 1
          %s186 = smul.addr %s185, 8
          %s187 = scalar_lea.vmem %s0, %s186
        $region36: #{mlp_pallas.1} parent=31 // pred_fallthru
          _
      $region32: #{mlp_pallas.1} parent=5 // pred_fallthru
        _
      %p188 = scmp.le.s32.totalorder 1, %s14
      %p189 = scmp.lt.s32.totalorder %s14, 3
      %p190 = pnand %p188, %p189
      %p191 = pneg %p190
      // Predicated region
      $region37: #{mlp_pallas.1} parent=5 // pred_check
        _
      $region38: #{mlp_pallas.1} parent=5 // pred_check_branch
        %193 = sbr.rel (%p190) target = $region40
      $region39: #{mlp_pallas.1} parent=5 // pred_region
        %s194 = ssub.s32 %s14, 1
        %p195 = scmp.lt.s32.totalorder %s19, 1
        %s196 = scalar_select %p195, %s19, 1
        %s197 = smul.addr %s196, 8
        %s198 = scalar_lea.vmem %s0, %s197
        %p199 = pneg %p40
        %p200 = pneg %p37
        %p201 = pneg %p61
        %p202 = pneg %p58
        %p203 = pneg %p82
        %p204 = pneg %p79
        %p205 = pneg %p103
        %p206 = pneg %p100
        %p207 = pneg %p124
        %p208 = pneg %p121
        %p209 = pneg %p150
        %p210 = pneg %p147
        %s211 = sand.u32 %s137, 1
        %s212 = scalar_lea.sflag [#allocation3], %s211
        %s213 = sand.u32 %s137, 1
        %s214 = smul.addr %s213, 8
        %s215 = scalar_lea.vmem [#allocation2], %s214
        %p216 = scmp.lt.s32.totalorder %s19, 1
        %s217 = scalar_select %p216, %s19, 1
        %s218 = smul.addr %s217, 8
        %s219 = scalar_lea.vmem %s0, %s218
        %v221 = vld [vmem:[%s219] sm:$0xff]
        %v222 = vpack.c.bf16 %v221, %v221
        %v223 = vld [vmem:[%s1] sm:$0xff]
        %v224 = vld [vmem:[%s1 + $0x8] sm:$0xff]
        %v225 = vld [vmem:[%s1 + $0x10] sm:$0xff]
        %v226 = vld [vmem:[%s1 + $0x18] sm:$0xff]
        %v227 = vpack.c.bf16 %v224, %v223
        %v228 = vpack.c.bf16 %v226, %v225
        %v229 = vld [vmem:[%s2] sm:$0x1]
        %v231 = vlaneseq
        %v232 = vshrl.u32 %v231, 7
        %v233 = vsub.s32 0, %v232
        %v234 = vrot.slane %v229, %v233
        %vm236 = vcmask 130048
        %v238 = vsel %vm236, %v222, 0
        %v241 = vsel %vm236, %v227, 0
        %v244 = vsel %vm236, %v228, 0
        %246 = vmatprep.subr.bf16.mxu0 0
        %247 = vmatpush1.bf16.xpose.msra.mxu0 %v241
        %248 = vmatprep.subr.bf16.mxu0 0
        %249 = vmatpush1.bf16.xpose.msra.mxu0 %v244
        %250 = vmatprep.subr.bf16.mxu0 0
        %251 = vmatpush1.bf16.xpose.msra.mxu0 0
        %252 = vmatprep.subr.bf16.mxu0 0
        %253 = vmatpush1.bf16.xpose.msra.mxu0 0
        %254 = vmatprep.subr.bf16.mxu0 0
        %255 = vmatpush1.bf16.xpose.msra.mxu0 0
        %256 = vmatprep.subr.bf16.mxu0 0
        %257 = vmatpush1.bf16.xpose.msra.mxu0 0
        %258 = vmatprep.subr.bf16.mxu0 0
        %259 = vmatpush1.bf16.xpose.msra.mxu0 0
        %260 = vmatprep.subr.bf16.mxu0 0
        %261 = vmatpush1.bf16.xpose.msra.mxu0 0
        %262 = vmatprep.subr.bf16.mxu0 0
        %263 = vmatpush1.bf16.xpose.msra.mxu0 0
        %264 = vmatprep.subr.bf16.mxu0 0
        %265 = vmatpush1.bf16.xpose.msra.mxu0 0
        %266 = vmatprep.subr.bf16.mxu0 0
        %267 = vmatpush1.bf16.xpose.msra.mxu0 0
        %268 = vmatprep.subr.bf16.mxu0 0
        %269 = vmatpush1.bf16.xpose.msra.mxu0 0
        %270 = vmatprep.subr.bf16.mxu0 0
        %271 = vmatpush1.bf16.xpose.msra.mxu0 0
        %272 = vmatprep.subr.bf16.mxu0 0
        %273 = vmatpush1.bf16.xpose.msra.mxu0 0
        %274 = vmatprep.subr.bf16.mxu0 0
        %275 = vmatpush1.bf16.xpose.msra.mxu0 0
        %276 = vmatprep.subr.bf16.mxu0 0
        %277 = vmatpush1.bf16.xpose.msra.mxu0 0
        %278 = vmatprep.mubr.bf16.mxu0 0
        %279 = vmatmul.mubr.bf16.gmra.mrb[0].mxu0 %v238
        %v280 = vpop.f32.mrb[0].mxu0
        %v281 = vadd.f32 %v234, %v280
        %v282 = vpop.f32.mrb[0].mxu0
        %v283 = vpop.f32.mrb[0].mxu0
        %v284 = vpop.f32.mrb[0].mxu0
        %285 = vdwg.mxu0
        %v286 = vmul.f32 %v281, %v281
        %v287 = vmul.f32 %v281, %v286
        %v288 = vmul.f32 %v287, 0.044715
        %v289 = vadd.f32 %v281, %v288
        %v290 = vmul.f32 %v289, 0.7978846
        %v291 = vtanh.pop %v290
        %v292 = vadd.f32 %v291, 1.0
        %v293 = vmul.f32 %v292, 0.5
        %v294 = vmul.f32 %v281, %v293
        %v295 = vld [vmem:[%s3] sm:$0xff]
        %v296 = vld [vmem:[%s3 + $0x8] sm:$0xff]
        %v297 = vpack.c.bf16 %v296, %v295
        %v298 = vpack.c.bf16 %v294, %v294
        %v299 = vld [vmem:[%s4] sm:$0x1]
        %v301 = vlaneseq
        %v302 = vshrl.u32 %v301, 7
        %v303 = vsub.s32 0, %v302
        %v304 = vrot.slane %v299, %v303
        %vm306 = vcmask 261120
        %v308 = vsel %vm306, %v298, 0
        %v311 = vsel %vm306, %v297, 0
        %313 = vmatprep.subr.bf16.mxu0 0
        %314 = vmatpush1.bf16.xpose.msra.mxu0 %v311
        %315 = vmatprep.subr.bf16.mxu0 0
        %316 = vmatpush1.bf16.xpose.msra.mxu0 0
        %317 = vmatprep.subr.bf16.mxu0 0
        %318 = vmatpush1.bf16.xpose.msra.mxu0 0
        %319 = vmatprep.subr.bf16.mxu0 0
        %320 = vmatpush1.bf16.xpose.msra.mxu0 0
        %321 = vmatprep.subr.bf16.mxu0 0
        %322 = vmatpush1.bf16.xpose.msra.mxu0 0
        %323 = vmatprep.subr.bf16.mxu0 0
        %324 = vmatpush1.bf16.xpose.msra.mxu0 0
        %325 = vmatprep.subr.bf16.mxu0 0
        %326 = vmatpush1.bf16.xpose.msra.mxu0 0
        %327 = vmatprep.subr.bf16.mxu0 0
        %328 = vmatpush1.bf16.xpose.msra.mxu0 0
        %329 = vmatprep.subr.bf16.mxu0 0
        %330 = vmatpush1.bf16.xpose.msra.mxu0 0
        %331 = vmatprep.subr.bf16.mxu0 0
        %332 = vmatpush1.bf16.xpose.msra.mxu0 0
        %333 = vmatprep.subr.bf16.mxu0 0
        %334 = vmatpush1.bf16.xpose.msra.mxu0 0
        %335 = vmatprep.subr.bf16.mxu0 0
        %336 = vmatpush1.bf16.xpose.msra.mxu0 0
        %337 = vmatprep.subr.bf16.mxu0 0
        %338 = vmatpush1.bf16.xpose.msra.mxu0 0
        %339 = vmatprep.subr.bf16.mxu0 0
        %340 = vmatpush1.bf16.xpose.msra.mxu0 0
        %341 = vmatprep.subr.bf16.mxu0 0
        %342 = vmatpush1.bf16.xpose.msra.mxu0 0
        %343 = vmatprep.subr.bf16.mxu0 0
        %344 = vmatpush1.bf16.xpose.msra.mxu0 0
        %345 = vmatprep.mubr.bf16.mxu0 0
        %346 = vmatmul.mubr.bf16.gmra.mrb[0].mxu0 %v308
        %v347 = vpop.f32.mrb[0].mxu0
        %v348 = vadd.f32 %v304, %v347
        %v349 = vpop.f32.mrb[0].mxu0
        %v350 = vpop.f32.mrb[0].mxu0
        %v351 = vpop.f32.mrb[0].mxu0
        %352 = vdwg.mxu0
        %353 = vst.msk [vmem:[%s215] sm:$0xff] %vm236, %v348
        %s354 = sand.u32 %s137, 1
        %s355 = scalar_lea.sflag [#allocation3], %s354
        %s356 = sand.u32 %s137, 1
        %s357 = smul.addr %s356, 8
        %s358 = scalar_lea.vmem [#allocation2], %s357
        // Predicated region
        $region41: #{mlp_pallas.1} parent=39 // pred_check
          %p359 = pneg %p147
        $region42: #{mlp_pallas.1} parent=39 // pred_check_branch
          %361 = sbr.rel (%p359) target = $region44
        $region43: #{mlp_pallas.1} parent=39 // pred_region
          %s363 = ssub.s32 128, 128
          %364 = vsyncadd %s355, %s363
          %s365 = smul.addr %s19, 128
          %s366 = scalar_lea.hbm %s5, %s365
          %s368 = sshll.u32 %s358, 4
          %s369 = int_to_ptr.vmem [resolvable:$true] %s368
          %371 = dma.vmem_to_hbm [thread:$0]  %s369, 128, %s366, %s355
        $region44: #{mlp_pallas.1} parent=39 // pred_fallthru
          _
      $region40: #{mlp_pallas.1} parent=5 // pred_fallthru
        _
      %p372 = scmp.le.s32.totalorder 2, %s14
      // Predicated region
      $region45: #{mlp_pallas.1} parent=5 // pred_check
        %p373 = pneg %p372
      $region46: #{mlp_pallas.1} parent=5 // pred_check_branch
        %375 = sbr.rel (%p373) target = $region48
      $region47: #{mlp_pallas.1} parent=5 // pred_region
        %s376 = ssub.s32 %s14, 2
        // Predicated region
        $region49: #{mlp_pallas.1} parent=47 // pred_check
          %p377 = pneg %p153
        $region50: #{mlp_pallas.1} parent=47 // pred_check_branch
          %379 = sbr.rel (%p377) target = $region52
        $region51: #{mlp_pallas.1} parent=47 // pred_region
          %s380 = sand.u32 %s138, 1
          %s381 = scalar_lea.sflag [#allocation3], %s380
          %s382 = sand.u32 %s138, 1
          %s383 = smul.addr %s382, 8
          %s384 = scalar_lea.vmem [#allocation2], %s383
          %385 = dma.done %s381, 128
        $region52: #{mlp_pallas.1} parent=47 // pred_fallthru
          _
      $region48: #{mlp_pallas.1} parent=5 // pred_fallthru
        _
    $region6: #{mlp_pallas.1} parent=1 // loop_footer
      %s18 = sadd.s32 1, %s14
    $region7: #{mlp_pallas.1} parent=1 // loop_footer_branch
      %13 = sbr.rel target = $region3
    $region8: #{mlp_pallas.1} parent=1 // loop_exit
      _
    %386 = vsyncpa [#allocation3], 1
    %s387 = scalar_lea.sflag [#allocation3], 1
    %388 = vsyncpa %s387, 1

</llo_original>
